<compile_context>
chip_gen: v5e
topology: v5e:2x2
jax: 0.10.0
libtpu: 0.0.40
codegen_flags: <defaults>
</compile_context>

<pallas_src>
import functools

import jax
import jax.numpy as jnp
from jax.experimental import pallas as pl
from jax.experimental.pallas import tpu as pltpu


def _down_pixel_w_kernel(x_ref, perm_ref, o_ref):
    """o = x @ P, with P a 0/1 permutation matrix -> exact data movement."""
    o_ref[...] = jnp.dot(
        x_ref[...],
        perm_ref[...],
        preferred_element_type=jnp.float32,
        precision=jax.lax.Precision.HIGHEST,
    ).astype(o_ref.dtype)


def build_width_shuffle_perm(h, w, stride, dtype=jnp.float32):
    """(H*W, H*W) one-hot matrix: P[h*W + wq*s + j, j*H*Wq + h*Wq + wq] = 1."""
    wq = w // stride
    l = h * w
    src = jnp.arange(l)
    hh = src // w
    ww = src % w
    dst = (ww % stride) * (h * wq) + hh * wq + (ww // stride)
    return (dst[:, None] == jnp.arange(l)[None, :]).astype(dtype)


@functools.partial(jax.jit, static_argnames=("stride", "block_rows"))
def down_pixel_w(x, perm, *, stride=2, block_rows=256):
    b, c, h, w = x.shape
    assert w % stride == 0, (w, stride)
    l = h * w
    rows = b * c
    x2 = x.reshape(rows, l)                       # free contiguous view
    tm = min(rows, block_rows)                    # row tile (fills MXU M dim)
    grid = (pl.cdiv(rows, tm),)

    y = pl.pallas_call(
        _down_pixel_w_kernel,
        out_shape=jax.ShapeDtypeStruct((rows, l), x.dtype),
        grid=grid,
        in_specs=[
            pl.BlockSpec((tm, l), lambda i: (i, 0)),
            pl.BlockSpec((l, l), lambda i: (0, 0)),   # resident across steps
        ],
        out_specs=pl.BlockSpec((tm, l), lambda i: (i, 0)),
        compiler_params=pltpu.CompilerParams(
            dimension_semantics=("parallel",)),       # megacore-friendly (v7x)
    )(x2, perm.astype(x.dtype))

    # Free contiguous view: (rows, H*W) == (B, C, s, H, W/s) -> (B, C*s, H, W/s)
    return y.reshape(b, c * stride, h, w // stride)


if __name__ == "__main__":
    key = jax.random.PRNGKey(0)
    B, C, H, W, stride = 2, 4, 16, 16, 2

    x = jax.random.normal(key, (B, C, H, W), jnp.float32)
    perm = build_width_shuffle_perm(H, W, stride)

    out = jax.block_until_ready(down_pixel_w(x, perm, stride=stride))

    # Pure-JAX reference mirroring the PyTorch view/permute/view.
    ref = x.reshape(B, C, H, W // stride, stride)
    ref = jnp.transpose(ref, (0, 1, 4, 2, 3)).reshape(B, C * stride, H, W // stride)

    assert out.shape == (B, C * stride, H, W // stride), out.shape
    assert bool(jnp.all(jnp.isfinite(out)))
    # Exact with precision=HIGHEST; loose tolerance kept purely as safety margin
    # (any permutation bug would produce O(1) errors and fail this check).
    assert float(jnp.max(jnp.abs(out - ref))) < 5e-2
    print("KERNEL_OK")
</pallas_src>

<mosaic_0001>
module attributes {stable_mosaic.version = 11 : i64} {
  func.func @_down_pixel_w_kernel(%arg0: i32, %arg1: memref<8x256xf32, #tpu.memory_space<vmem>>, %arg2: memref<256x256xf32, #tpu.memory_space<vmem>>, %arg3: memref<8x256xf32, #tpu.memory_space<vmem>>) attributes {dimension_semantics = [#tpu.dimension_semantics<parallel>], iteration_bounds = array<i64: 1>, scalar_prefetch = 0 : i64, scratch_operands = 0 : i64, tpu.core_type = #tpu.core_type<tc>, window_params = [{transform_indices = @transform_0, window_bounds = array<i64: 8, 256>}, {pipeline_mode = #tpu.pipeline_mode<synchronous>, transform_indices = @transform_1, window_bounds = array<i64: 256, 256>}, {transform_indices = @transform_2, window_bounds = array<i64: 8, 256>}]} {
    %c0 = arith.constant 0 : index
    %c0_0 = arith.constant 0 : index
    %0 = vector.load %arg1[%c0, %c0_0] : memref<8x256xf32, #tpu.memory_space<vmem>>, vector<8x256xf32>
    %c0_1 = arith.constant 0 : index
    %c0_2 = arith.constant 0 : index
    %1 = vector.load %arg2[%c0_1, %c0_2] : memref<256x256xf32, #tpu.memory_space<vmem>>, vector<256x256xf32>
    %cst = arith.constant dense<0.000000e+00> : vector<8x256xf32>
    %2 = tpu.matmul %0, %1, %cst {dimension_numbers = #tpu.dot_dimension_numbers<[1], [0], [0], [1], [0, 0, 1, 1], [], []>, precision = #tpu.contract_precision<fp32>} : vector<8x256xf32>, vector<256x256xf32>, vector<8x256xf32> -> vector<8x256xf32>
    %c0_3 = arith.constant 0 : index
    %c0_4 = arith.constant 0 : index
    %3 = vector.load %arg3[%c0_3, %c0_4] : memref<8x256xf32, #tpu.memory_space<vmem>>, vector<8x256xf32>
    tpu.vector_store %arg3[%c0_3, %c0_4], %2 {strides = array<i32>} : memref<8x256xf32, #tpu.memory_space<vmem>>, vector<8x256xf32>,
    return
  }
  func.func @transform_0(%arg0: i32) -> (i32, i32) {
    %c0_i32 = arith.constant 0 : i32
    %c0_i32_0 = arith.constant 0 : i32
    return %arg0, %c0_i32 : i32, i32
  }
  func.func @transform_1(%arg0: i32) -> (i32, i32) {
    %c0_i32 = arith.constant 0 : i32
    %c0_i32_0 = arith.constant 0 : i32
    %c0_i32_1 = arith.constant 0 : i32
    return %c0_i32, %c0_i32_0 : i32, i32
  }
  func.func @transform_2(%arg0: i32) -> (i32, i32) {
    %c0_i32 = arith.constant 0 : i32
    %c0_i32_0 = arith.constant 0 : i32
    return %arg0, %c0_i32 : i32, i32
  }
}

</mosaic_0001>

<llo_original>
// kernel: down_pixel_w.1
$region0: #{down_pixel_w.1}
  #allocation0 [shape = 'u32[]', space=smem, size = 0x4, offset = 0x4, fixed_abs, tag = 'smem constant byte address 0x4 - core index']
  #allocation1 [shape = 'u32[72,128]{1,0:T(1,128)}', space=vmem, size = 0x9000, scoped, tag = 'internal scratch']
  %s0 = inlined_call_operand.vmem [shape: f32[8,256], index: 0, kind: input, shape index: {}]
  %s1 = inlined_call_operand.hbm [shape: f32[256,256], index: 1, kind: input, shape index: {}]
  %s2 = inlined_call_operand.vmem [shape: f32[8,256], index: 2, kind: output, shape index: {}]
  %s3 = sld [smem:[#allocation0]]
  $region22: #{down_pixel_w.1} parent=0
    _
  %s5 = ssub.s32 1, %s3
  %s6 = scalar_select 0, %s5, %s3
  $region1: #{down_pixel_w.1} parent=0
    #allocation2 [shape = 'u8[262144]{0}', space=vmem, size = 0x40000, scoped, tag = 'input window, operand 1, single buffered']
    #allocation3 [shape = 's32[1]{0}', space=sflag, size = 0x4, scoped, tag = 'scoped memory for down_pixel_w.1']
    %7 = vsyncpa [#allocation3], 0
    // Predicated region
    $region2: #{down_pixel_w.1} parent=1 // pred_check
      _
    $region3: #{down_pixel_w.1} parent=1 // pred_check_branch
      %9 = sbr.rel (0) target = $region5
    $region4: #{down_pixel_w.1} parent=1 // pred_region
      _
    $region5: #{down_pixel_w.1} parent=1 // pred_fallthru
      _
    // Predicated region
    $region6: #{down_pixel_w.1} parent=1 // pred_check
      _
    $region7: #{down_pixel_w.1} parent=1 // pred_check_branch
      %11 = sbr.rel (0) target = $region9
    $region8: #{down_pixel_w.1} parent=1 // pred_region
      %13 = vsyncadd [#allocation3], 0
      %s14 = sshll.u32 %s1, 4
      %s15 = int_to_ptr.hbm [resolvable:$true] %s14
      %s16 = sshll.u32 [#allocation2], 4
      %s17 = int_to_ptr.vmem [resolvable:$true] %s16
      %22 = dma.hbm_to_vmem [thread:$0]  %s15, 8192, %s17, [#allocation3], 256, 256, 16
    $region9: #{down_pixel_w.1} parent=1 // pred_fallthru
      _
    // Predicated region
    $region10: #{down_pixel_w.1} parent=1 // pred_check
      _
    $region11: #{down_pixel_w.1} parent=1 // pred_check_branch
      %24 = sbr.rel (0) target = $region13
    $region12: #{down_pixel_w.1} parent=1 // pred_region
      %26 = dma.done [#allocation3], 8192
    $region13: #{down_pixel_w.1} parent=1 // pred_fallthru
      _
    %v27 = vld [vmem:[%s0] sm:$0xff]
    %v28 = vld [vmem:[%s0 + $0x8] sm:$0xff]
    %v29 = vld [vmem:[#allocation2] sm:$0xff]
    %v30 = vld [vmem:[#allocation2 + $0x8] sm:$0xff]
    %v31 = vld [vmem:[#allocation2 + $0x10] sm:$0xff]
    %v32 = vld [vmem:[#allocation2 + $0x18] sm:$0xff]
    %v33 = vld [vmem:[#allocation2 + $0x20] sm:$0xff]
    %v34 = vld [vmem:[#allocation2 + $0x28] sm:$0xff]
    %v35 = vld [vmem:[#allocation2 + $0x30] sm:$0xff]
    %v36 = vld [vmem:[#allocation2 + $0x38] sm:$0xff]
    %v37 = vld [vmem:[#allocation2 + $0x40] sm:$0xff]
    %v38 = vld [vmem:[#allocation2 + $0x48] sm:$0xff]
    %v39 = vld [vmem:[#allocation2 + $0x50] sm:$0xff]
    %v40 = vld [vmem:[#allocation2 + $0x58] sm:$0xff]
    %v41 = vld [vmem:[#allocation2 + $0x60] sm:$0xff]
    %v42 = vld [vmem:[#allocation2 + $0x68] sm:$0xff]
    %v43 = vld [vmem:[#allocation2 + $0x70] sm:$0xff]
    %v44 = vld [vmem:[#allocation2 + $0x78] sm:$0xff]
    %v45 = vld [vmem:[#allocation2 + $0x80] sm:$0xff]
    %v46 = vld [vmem:[#allocation2 + $0x88] sm:$0xff]
    %v47 = vld [vmem:[#allocation2 + $0x90] sm:$0xff]
    %v48 = vld [vmem:[#allocation2 + $0x98] sm:$0xff]
    %v49 = vld [vmem:[#allocation2 + $0xa0] sm:$0xff]
    %v50 = vld [vmem:[#allocation2 + $0xa8] sm:$0xff]
    %v51 = vld [vmem:[#allocation2 + $0xb0] sm:$0xff]
    %v52 = vld [vmem:[#allocation2 + $0xb8] sm:$0xff]
    %v53 = vld [vmem:[#allocation2 + $0xc0] sm:$0xff]
    %v54 = vld [vmem:[#allocation2 + $0xc8] sm:$0xff]
    %v55 = vld [vmem:[#allocation2 + $0xd0] sm:$0xff]
    %v56 = vld [vmem:[#allocation2 + $0xd8] sm:$0xff]
    %v57 = vld [vmem:[#allocation2 + $0xe0] sm:$0xff]
    %v58 = vld [vmem:[#allocation2 + $0xe8] sm:$0xff]
    %v59 = vld [vmem:[#allocation2 + $0xf0] sm:$0xff]
    %v60 = vld [vmem:[#allocation2 + $0xf8] sm:$0xff]
    %v61 = vld [vmem:[#allocation2 + $0x100] sm:$0xff]
    %v62 = vld [vmem:[#allocation2 + $0x108] sm:$0xff]
    %v63 = vld [vmem:[#allocation2 + $0x110] sm:$0xff]
    %v64 = vld [vmem:[#allocation2 + $0x118] sm:$0xff]
    %v65 = vld [vmem:[#allocation2 + $0x120] sm:$0xff]
    %v66 = vld [vmem:[#allocation2 + $0x128] sm:$0xff]
    %v67 = vld [vmem:[#allocation2 + $0x130] sm:$0xff]
    %v68 = vld [vmem:[#allocation2 + $0x138] sm:$0xff]
    %v69 = vld [vmem:[#allocation2 + $0x140] sm:$0xff]
    %v70 = vld [vmem:[#allocation2 + $0x148] sm:$0xff]
    %v71 = vld [vmem:[#allocation2 + $0x150] sm:$0xff]
    %v72 = vld [vmem:[#allocation2 + $0x158] sm:$0xff]
    %v73 = vld [vmem:[#allocation2 + $0x160] sm:$0xff]
    %v74 = vld [vmem:[#allocation2 + $0x168] sm:$0xff]
    %v75 = vld [vmem:[#allocation2 + $0x170] sm:$0xff]
    %v76 = vld [vmem:[#allocation2 + $0x178] sm:$0xff]
    %v77 = vld [vmem:[#allocation2 + $0x180] sm:$0xff]
    %v78 = vld [vmem:[#allocation2 + $0x188] sm:$0xff]
    %v79 = vld [vmem:[#allocation2 + $0x190] sm:$0xff]
    %v80 = vld [vmem:[#allocation2 + $0x198] sm:$0xff]
    %v81 = vld [vmem:[#allocation2 + $0x1a0] sm:$0xff]
    %v82 = vld [vmem:[#allocation2 + $0x1a8] sm:$0xff]
    %v83 = vld [vmem:[#allocation2 + $0x1b0] sm:$0xff]
    %v84 = vld [vmem:[#allocation2 + $0x1b8] sm:$0xff]
    %v85 = vld [vmem:[#allocation2 + $0x1c0] sm:$0xff]
    %v86 = vld [vmem:[#allocation2 + $0x1c8] sm:$0xff]
    %v87 = vld [vmem:[#allocation2 + $0x1d0] sm:$0xff]
    %v88 = vld [vmem:[#allocation2 + $0x1d8] sm:$0xff]
    %v89 = vld [vmem:[#allocation2 + $0x1e0] sm:$0xff]
    %v90 = vld [vmem:[#allocation2 + $0x1e8] sm:$0xff]
    %v91 = vld [vmem:[#allocation2 + $0x1f0] sm:$0xff]
    %v92 = vld [vmem:[#allocation2 + $0x1f8] sm:$0xff]
    %v93 = vand.u32 %v59, 4294901760
    %94 = vmatpush.msra.mxu0 %v93
    %v95 = vand.u32 %v57, 4294901760
    %96 = vmatpush.msra.mxu0 %v95
    %v97 = vand.u32 %v55, 4294901760
    %98 = vmatpush.msra.mxu0 %v97
    %v99 = vand.u32 %v53, 4294901760
    %100 = vmatpush.msra.mxu0 %v99
    %v101 = vand.u32 %v51, 4294901760
    %102 = vmatpush.msra.mxu0 %v101
    %v103 = vand.u32 %v49, 4294901760
    %104 = vmatpush.msra.mxu0 %v103
    %v105 = vand.u32 %v47, 4294901760
    %106 = vmatpush.msra.mxu0 %v105
    %v107 = vand.u32 %v45, 4294901760
    %108 = vmatpush.msra.mxu0 %v107
    %v109 = vand.u32 %v43, 4294901760
    %110 = vmatpush.msra.mxu0 %v109
    %v111 = vand.u32 %v41, 4294901760
    %112 = vmatpush.msra.mxu0 %v111
    %v113 = vand.u32 %v39, 4294901760
    %114 = vmatpush.msra.mxu0 %v113
    %v115 = vand.u32 %v37, 4294901760
    %116 = vmatpush.msra.mxu0 %v115
    %v117 = vand.u32 %v35, 4294901760
    %118 = vmatpush.msra.mxu0 %v117
    %v119 = vand.u32 %v33, 4294901760
    %120 = vmatpush.msra.mxu0 %v119
    %v121 = vand.u32 %v31, 4294901760
    %122 = vmatpush.msra.mxu0 %v121
    %v123 = vand.u32 %v29, 4294901760
    %124 = vmatpush.msra.mxu0 %v123
    %v125 = vand.u32 %v27, 4294901760
    %v126 = vsub.f32 %v27, %v125
    %v127 = vand.u32 %v126, 4294901760
    %v128 = vsub.f32 %v126, %v127
    %v129 = vand.u32 %v128, 4294901760
    %130 = vmatmul.f32.gmra.mxu0 %v129
    %v131 = vpop.f32.mrf.mxu0
    %v132 = vadd.f32 0.0, %v131
    %133 = vdwg.mxu0
    %v134 = vand.u32 %v59, 4294901760
    %v135 = vsub.f32 %v59, %v134
    %v136 = vand.u32 %v135, 4294901760
    %v137 = vsub.f32 %v135, %v136
    %v138 = vand.u32 %v137, 4294901760
    %139 = vmatpush.msra.mxu0 %v138
    %v140 = vand.u32 %v57, 4294901760
    %v141 = vsub.f32 %v57, %v140
    %v142 = vand.u32 %v141, 4294901760
    %v143 = vsub.f32 %v141, %v142
    %v144 = vand.u32 %v143, 4294901760
    %145 = vmatpush.msra.mxu0 %v144
    %v146 = vand.u32 %v55, 4294901760
    %v147 = vsub.f32 %v55, %v146
    %v148 = vand.u32 %v147, 4294901760
    %v149 = vsub.f32 %v147, %v148
    %v150 = vand.u32 %v149, 4294901760
    %151 = vmatpush.msra.mxu0 %v150
    %v152 = vand.u32 %v53, 4294901760
    %v153 = vsub.f32 %v53, %v152
    %v154 = vand.u32 %v153, 4294901760
    %v155 = vsub.f32 %v153, %v154
    %v156 = vand.u32 %v155, 4294901760
    %157 = vmatpush.msra.mxu0 %v156
    %v158 = vand.u32 %v51, 4294901760
    %v159 = vsub.f32 %v51, %v158
    %v160 = vand.u32 %v159, 4294901760
    %v161 = vsub.f32 %v159, %v160
    %v162 = vand.u32 %v161, 4294901760
    %163 = vmatpush.msra.mxu0 %v162
    %v164 = vand.u32 %v49, 4294901760
    %v165 = vsub.f32 %v49, %v164
    %v166 = vand.u32 %v165, 4294901760
    %v167 = vsub.f32 %v165, %v166
    %v168 = vand.u32 %v167, 4294901760
    %169 = vmatpush.msra.mxu0 %v168
    %v170 = vand.u32 %v47, 4294901760
    %v171 = vsub.f32 %v47, %v170
    %v172 = vand.u32 %v171, 4294901760
    %v173 = vsub.f32 %v171, %v172
    %v174 = vand.u32 %v173, 4294901760
    %175 = vmatpush.msra.mxu0 %v174
    %v176 = vand.u32 %v45, 4294901760
    %v177 = vsub.f32 %v45, %v176
    %v178 = vand.u32 %v177, 4294901760
    %v179 = vsub.f32 %v177, %v178
    %v180 = vand.u32 %v179, 4294901760
    %181 = vmatpush.msra.mxu0 %v180
    %v182 = vand.u32 %v43, 4294901760
    %v183 = vsub.f32 %v43, %v182
    %v184 = vand.u32 %v183, 4294901760
    %v185 = vsub.f32 %v183, %v184
    %v186 = vand.u32 %v185, 4294901760
    %187 = vmatpush.msra.mxu0 %v186
    %v188 = vand.u32 %v41, 4294901760
    %v189 = vsub.f32 %v41, %v188
    %v190 = vand.u32 %v189, 4294901760
    %v191 = vsub.f32 %v189, %v190
    %v192 = vand.u32 %v191, 4294901760
    %193 = vmatpush.msra.mxu0 %v192
    %v194 = vand.u32 %v39, 4294901760
    %v195 = vsub.f32 %v39, %v194
    %v196 = vand.u32 %v195, 4294901760
    %v197 = vsub.f32 %v195, %v196
    %v198 = vand.u32 %v197, 4294901760
    %199 = vmatpush.msra.mxu0 %v198
    %v200 = vand.u32 %v37, 4294901760
    %v201 = vsub.f32 %v37, %v200
    %v202 = vand.u32 %v201, 4294901760
    %v203 = vsub.f32 %v201, %v202
    %v204 = vand.u32 %v203, 4294901760
    %205 = vmatpush.msra.mxu0 %v204
    %v206 = vand.u32 %v35, 4294901760
    %v207 = vsub.f32 %v35, %v206
    %v208 = vand.u32 %v207, 4294901760
    %v209 = vsub.f32 %v207, %v208
    %v210 = vand.u32 %v209, 4294901760
    %211 = vmatpush.msra.mxu0 %v210
    %v212 = vand.u32 %v33, 4294901760
    %v213 = vsub.f32 %v33, %v212
    %v214 = vand.u32 %v213, 4294901760
    %v215 = vsub.f32 %v213, %v214
    %v216 = vand.u32 %v215, 4294901760
    %217 = vmatpush.msra.mxu0 %v216
    %v218 = vand.u32 %v31, 4294901760
    %v219 = vsub.f32 %v31, %v218
    %v220 = vand.u32 %v219, 4294901760
    %v221 = vsub.f32 %v219, %v220
    %v222 = vand.u32 %v221, 4294901760
    %223 = vmatpush.msra.mxu0 %v222
    %v224 = vand.u32 %v29, 4294901760
    %v225 = vsub.f32 %v29, %v224
    %v226 = vand.u32 %v225, 4294901760
    %v227 = vsub.f32 %v225, %v226
    %v228 = vand.u32 %v227, 4294901760
    %229 = vmatpush.msra.mxu0 %v228
    %v230 = vand.u32 %v27, 4294901760
    %231 = vmatmul.f32.gmra.mxu0 %v230
    %v232 = vpop.f32.mrf.mxu0
    %v233 = vadd.f32 %v132, %v232
    %234 = vdwg.mxu0
    %v235 = vand.u32 %v59, 4294901760
    %v236 = vsub.f32 %v59, %v235
    %237 = vmatpush.msra.mxu0 %v236
    %v238 = vand.u32 %v57, 4294901760
    %v239 = vsub.f32 %v57, %v238
    %240 = vmatpush.msra.mxu0 %v239
    %v241 = vand.u32 %v55, 4294901760
    %v242 = vsub.f32 %v55, %v241
    %243 = vmatpush.msra.mxu0 %v242
    %v244 = vand.u32 %v53, 4294901760
    %v245 = vsub.f32 %v53, %v244
    %246 = vmatpush.msra.mxu0 %v245
    %v247 = vand.u32 %v51, 4294901760
    %v248 = vsub.f32 %v51, %v247
    %249 = vmatpush.msra.mxu0 %v248
    %v250 = vand.u32 %v49, 4294901760
    %v251 = vsub.f32 %v49, %v250
    %252 = vmatpush.msra.mxu0 %v251
    %v253 = vand.u32 %v47, 4294901760
    %v254 = vsub.f32 %v47, %v253
    %255 = vmatpush.msra.mxu0 %v254
    %v256 = vand.u32 %v45, 4294901760
    %v257 = vsub.f32 %v45, %v256
    %258 = vmatpush.msra.mxu0 %v257
    %v259 = vand.u32 %v43, 4294901760
    %v260 = vsub.f32 %v43, %v259
    %261 = vmatpush.msra.mxu0 %v260
    %v262 = vand.u32 %v41, 4294901760
    %v263 = vsub.f32 %v41, %v262
    %264 = vmatpush.msra.mxu0 %v263
    %v265 = vand.u32 %v39, 4294901760
    %v266 = vsub.f32 %v39, %v265
    %267 = vmatpush.msra.mxu0 %v266
    %v268 = vand.u32 %v37, 4294901760
    %v269 = vsub.f32 %v37, %v268
    %270 = vmatpush.msra.mxu0 %v269
    %v271 = vand.u32 %v35, 4294901760
    %v272 = vsub.f32 %v35, %v271
    %273 = vmatpush.msra.mxu0 %v272
    %v274 = vand.u32 %v33, 4294901760
    %v275 = vsub.f32 %v33, %v274
    %276 = vmatpush.msra.mxu0 %v275
    %v277 = vand.u32 %v31, 4294901760
    %v278 = vsub.f32 %v31, %v277
    %279 = vmatpush.msra.mxu0 %v278
    %v280 = vand.u32 %v29, 4294901760
    %v281 = vsub.f32 %v29, %v280
    %282 = vmatpush.msra.mxu0 %v281
    %v283 = vand.u32 %v27, 4294901760
    %v284 = vsub.f32 %v27, %v283
    %285 = vmatmul.f32.gmra.mxu0 %v284
    %v286 = vpop.f32.mrf.mxu0
    %v287 = vadd.f32 %v233, %v286
    %288 = vdwg.mxu0
    %v289 = vand.u32 %v59, 4294901760
    %290 = vmatpush.msra.mxu0 %v289
    %v291 = vand.u32 %v57, 4294901760
    %292 = vmatpush.msra.mxu0 %v291
    %v293 = vand.u32 %v55, 4294901760
    %294 = vmatpush.msra.mxu0 %v293
    %v295 = vand.u32 %v53, 4294901760
    %296 = vmatpush.msra.mxu0 %v295
    %v297 = vand.u32 %v51, 4294901760
    %298 = vmatpush.msra.mxu0 %v297
    %v299 = vand.u32 %v49, 4294901760
    %300 = vmatpush.msra.mxu0 %v299
    %v301 = vand.u32 %v47, 4294901760
    %302 = vmatpush.msra.mxu0 %v301
    %v303 = vand.u32 %v45, 4294901760
    %304 = vmatpush.msra.mxu0 %v303
    %v305 = vand.u32 %v43, 4294901760
    %306 = vmatpush.msra.mxu0 %v305
    %v307 = vand.u32 %v41, 4294901760
    %308 = vmatpush.msra.mxu0 %v307
    %v309 = vand.u32 %v39, 4294901760
    %310 = vmatpush.msra.mxu0 %v309
    %v311 = vand.u32 %v37, 4294901760
    %312 = vmatpush.msra.mxu0 %v311
    %v313 = vand.u32 %v35, 4294901760
    %314 = vmatpush.msra.mxu0 %v313
    %v315 = vand.u32 %v33, 4294901760
    %316 = vmatpush.msra.mxu0 %v315
    %v317 = vand.u32 %v31, 4294901760
    %318 = vmatpush.msra.mxu0 %v317
    %v319 = vand.u32 %v29, 4294901760
    %320 = vmatpush.msra.mxu0 %v319
    %v321 = vand.u32 %v27, 4294901760
    %v322 = vsub.f32 %v27, %v321
    %v323 = vand.u32 %v322, 4294901760
    %324 = vmatmul.f32.gmra.mxu0 %v323
    %v325 = vpop.f32.mrf.mxu0
    %v326 = vadd.f32 %v287, %v325
    %327 = vdwg.mxu0
    %v328 = vand.u32 %v59, 4294901760
    %v329 = vsub.f32 %v59, %v328
    %v330 = vand.u32 %v329, 4294901760
    %331 = vmatpush.msra.mxu0 %v330
    %v332 = vand.u32 %v57, 4294901760
    %v333 = vsub.f32 %v57, %v332
    %v334 = vand.u32 %v333, 4294901760
    %335 = vmatpush.msra.mxu0 %v334
    %v336 = vand.u32 %v55, 4294901760
    %v337 = vsub.f32 %v55, %v336
    %v338 = vand.u32 %v337, 4294901760
    %339 = vmatpush.msra.mxu0 %v338
    %v340 = vand.u32 %v53, 4294901760
    %v341 = vsub.f32 %v53, %v340
    %v342 = vand.u32 %v341, 4294901760
    %343 = vmatpush.msra.mxu0 %v342
    %v344 = vand.u32 %v51, 4294901760
    %v345 = vsub.f32 %v51, %v344
    %v346 = vand.u32 %v345, 4294901760
    %347 = vmatpush.msra.mxu0 %v346
    %v348 = vand.u32 %v49, 4294901760
    %v349 = vsub.f32 %v49, %v348
    %v350 = vand.u32 %v349, 4294901760
    %351 = vmatpush.msra.mxu0 %v350
    %v352 = vand.u32 %v47, 4294901760
    %v353 = vsub.f32 %v47, %v352
    %v354 = vand.u32 %v353, 4294901760
    %355 = vmatpush.msra.mxu0 %v354
    %v356 = vand.u32 %v45, 4294901760
    %v357 = vsub.f32 %v45, %v356
    %v358 = vand.u32 %v357, 4294901760
    %359 = vmatpush.msra.mxu0 %v358
    %v360 = vand.u32 %v43, 4294901760
    %v361 = vsub.f32 %v43, %v360
    %v362 = vand.u32 %v361, 4294901760
    %363 = vmatpush.msra.mxu0 %v362
    %v364 = vand.u32 %v41, 4294901760
    %v365 = vsub.f32 %v41, %v364
    %v366 = vand.u32 %v365, 4294901760
    %367 = vmatpush.msra.mxu0 %v366
    %v368 = vand.u32 %v39, 4294901760
    %v369 = vsub.f32 %v39, %v368
    %v370 = vand.u32 %v369, 4294901760
    %371 = vmatpush.msra.mxu0 %v370
    %v372 = vand.u32 %v37, 4294901760
    %v373 = vsub.f32 %v37, %v372
    %v374 = vand.u32 %v373, 4294901760
    %375 = vmatpush.msra.mxu0 %v374
    %v376 = vand.u32 %v35, 4294901760
    %v377 = vsub.f32 %v35, %v376
    %v378 = vand.u32 %v377, 4294901760
    %379 = vmatpush.msra.mxu0 %v378
    %v380 = vand.u32 %v33, 4294901760
    %v381 = vsub.f32 %v33, %v380
    %v382 = vand.u32 %v381, 4294901760
    %383 = vmatpush.msra.mxu0 %v382
    %v384 = vand.u32 %v31, 4294901760
    %v385 = vsub.f32 %v31, %v384
    %v386 = vand.u32 %v385, 4294901760
    %387 = vmatpush.msra.mxu0 %v386
    %v388 = vand.u32 %v29, 4294901760
    %v389 = vsub.f32 %v29, %v388
    %v390 = vand.u32 %v389, 4294901760
    %391 = vmatpush.msra.mxu0 %v390
    %v392 = vand.u32 %v27, 4294901760
    %393 = vmatmul.f32.gmra.mxu0 %v392
    %v394 = vpop.f32.mrf.mxu0
    %v395 = vadd.f32 %v326, %v394
    %396 = vdwg.mxu0
    %v397 = vand.u32 %v59, 4294901760
    %398 = vmatpush.msra.mxu0 %v397
    %v399 = vand.u32 %v57, 4294901760
    %400 = vmatpush.msra.mxu0 %v399
    %v401 = vand.u32 %v55, 4294901760
    %402 = vmatpush.msra.mxu0 %v401
    %v403 = vand.u32 %v53, 4294901760
    %404 = vmatpush.msra.mxu0 %v403
    %v405 = vand.u32 %v51, 4294901760
    %406 = vmatpush.msra.mxu0 %v405
    %v407 = vand.u32 %v49, 4294901760
    %408 = vmatpush.msra.mxu0 %v407
    %v409 = vand.u32 %v47, 4294901760
    %410 = vmatpush.msra.mxu0 %v409
    %v411 = vand.u32 %v45, 4294901760
    %412 = vmatpush.msra.mxu0 %v411
    %v413 = vand.u32 %v43, 4294901760
    %414 = vmatpush.msra.mxu0 %v413
    %v415 = vand.u32 %v41, 4294901760
    %416 = vmatpush.msra.mxu0 %v415
    %v417 = vand.u32 %v39, 4294901760
    %418 = vmatpush.msra.mxu0 %v417
    %v419 = vand.u32 %v37, 4294901760
    %420 = vmatpush.msra.mxu0 %v419
    %v421 = vand.u32 %v35, 4294901760
    %422 = vmatpush.msra.mxu0 %v421
    %v423 = vand.u32 %v33, 4294901760
    %424 = vmatpush.msra.mxu0 %v423
    %v425 = vand.u32 %v31, 4294901760
    %426 = vmatpush.msra.mxu0 %v425
    %v427 = vand.u32 %v29, 4294901760
    %428 = vmatpush.msra.mxu0 %v427
    %v429 = vand.u32 %v27, 4294901760
    %430 = vmatmul.f32.gmra.mxu0 %v429
    %v431 = vpop.f32.mrf.mxu0
    %v432 = vadd.f32 %v395, %v431
    %433 = vdwg.mxu0
    %v434 = vand.u32 %v91, 4294901760
    %435 = vmatpush.msra.mxu0 %v434
    %v436 = vand.u32 %v89, 4294901760
    %437 = vmatpush.msra.mxu0 %v436
    %v438 = vand.u32 %v87, 4294901760
    %439 = vmatpush.msra.mxu0 %v438
    %v440 = vand.u32 %v85, 4294901760
    %441 = vmatpush.msra.mxu0 %v440
    %v442 = vand.u32 %v83, 4294901760
    %443 = vmatpush.msra.mxu0 %v442
    %v444 = vand.u32 %v81, 4294901760
    %445 = vmatpush.msra.mxu0 %v444
    %v446 = vand.u32 %v79, 4294901760
    %447 = vmatpush.msra.mxu0 %v446
    %v448 = vand.u32 %v77, 4294901760
    %449 = vmatpush.msra.mxu0 %v448
    %v450 = vand.u32 %v75, 4294901760
    %451 = vmatpush.msra.mxu0 %v450
    %v452 = vand.u32 %v73, 4294901760
    %453 = vmatpush.msra.mxu0 %v452
    %v454 = vand.u32 %v71, 4294901760
    %455 = vmatpush.msra.mxu0 %v454
    %v456 = vand.u32 %v69, 4294901760
    %457 = vmatpush.msra.mxu0 %v456
    %v458 = vand.u32 %v67, 4294901760
    %459 = vmatpush.msra.mxu0 %v458
    %v460 = vand.u32 %v65, 4294901760
    %461 = vmatpush.msra.mxu0 %v460
    %v462 = vand.u32 %v63, 4294901760
    %463 = vmatpush.msra.mxu0 %v462
    %v464 = vand.u32 %v61, 4294901760
    %465 = vmatpush.msra.mxu0 %v464
    %v466 = vand.u32 %v28, 4294901760
    %v467 = vsub.f32 %v28, %v466
    %v468 = vand.u32 %v467, 4294901760
    %v469 = vsub.f32 %v467, %v468
    %v470 = vand.u32 %v469, 4294901760
    %471 = vmatmul.f32.gmra.mxu0 %v470
    %v472 = vpop.f32.mrf.mxu0
    %v473 = vadd.f32 %v432, %v472
    %474 = vdwg.mxu0
    %v475 = vand.u32 %v91, 4294901760
    %v476 = vsub.f32 %v91, %v475
    %v477 = vand.u32 %v476, 4294901760
    %v478 = vsub.f32 %v476, %v477
    %v479 = vand.u32 %v478, 4294901760
    %480 = vmatpush.msra.mxu0 %v479
    %v481 = vand.u32 %v89, 4294901760
    %v482 = vsub.f32 %v89, %v481
    %v483 = vand.u32 %v482, 4294901760
    %v484 = vsub.f32 %v482, %v483
    %v485 = vand.u32 %v484, 4294901760
    %486 = vmatpush.msra.mxu0 %v485
    %v487 = vand.u32 %v87, 4294901760
    %v488 = vsub.f32 %v87, %v487
    %v489 = vand.u32 %v488, 4294901760
    %v490 = vsub.f32 %v488, %v489
    %v491 = vand.u32 %v490, 4294901760
    %492 = vmatpush.msra.mxu0 %v491
    %v493 = vand.u32 %v85, 4294901760
    %v494 = vsub.f32 %v85, %v493
    %v495 = vand.u32 %v494, 4294901760
    %v496 = vsub.f32 %v494, %v495
    %v497 = vand.u32 %v496, 4294901760
    %498 = vmatpush.msra.mxu0 %v497
    %v499 = vand.u32 %v83, 4294901760
    %v500 = vsub.f32 %v83, %v499
    %v501 = vand.u32 %v500, 4294901760
    %v502 = vsub.f32 %v500, %v501
    %v503 = vand.u32 %v502, 4294901760
    %504 = vmatpush.msra.mxu0 %v503
    %v505 = vand.u32 %v81, 4294901760
    %v506 = vsub.f32 %v81, %v505
    %v507 = vand.u32 %v506, 4294901760
    %v508 = vsub.f32 %v506, %v507
    %v509 = vand.u32 %v508, 4294901760
    %510 = vmatpush.msra.mxu0 %v509
    %v511 = vand.u32 %v79, 4294901760
    %v512 = vsub.f32 %v79, %v511
    %v513 = vand.u32 %v512, 4294901760
    %v514 = vsub.f32 %v512, %v513
    %v515 = vand.u32 %v514, 4294901760
    %516 = vmatpush.msra.mxu0 %v515
    %v517 = vand.u32 %v77, 4294901760
    %v518 = vsub.f32 %v77, %v517
    %v519 = vand.u32 %v518, 4294901760
    %v520 = vsub.f32 %v518, %v519
    %v521 = vand.u32 %v520, 4294901760
    %522 = vmatpush.msra.mxu0 %v521
    %v523 = vand.u32 %v75, 4294901760
    %v524 = vsub.f32 %v75, %v523
    %v525 = vand.u32 %v524, 4294901760
    %v526 = vsub.f32 %v524, %v525
    %v527 = vand.u32 %v526, 4294901760
    %528 = vmatpush.msra.mxu0 %v527
    %v529 = vand.u32 %v73, 4294901760
    %v530 = vsub.f32 %v73, %v529
    %v531 = vand.u32 %v530, 4294901760
    %v532 = vsub.f32 %v530, %v531
    %v533 = vand.u32 %v532, 4294901760
    %534 = vmatpush.msra.mxu0 %v533
    %v535 = vand.u32 %v71, 4294901760
    %v536 = vsub.f32 %v71, %v535
    %v537 = vand.u32 %v536, 4294901760
    %v538 = vsub.f32 %v536, %v537
    %v539 = vand.u32 %v538, 4294901760
    %540 = vmatpush.msra.mxu0 %v539
    %v541 = vand.u32 %v69, 4294901760
    %v542 = vsub.f32 %v69, %v541
    %v543 = vand.u32 %v542, 4294901760
    %v544 = vsub.f32 %v542, %v543
    %v545 = vand.u32 %v544, 4294901760
    %546 = vmatpush.msra.mxu0 %v545
    %v547 = vand.u32 %v67, 4294901760
    %v548 = vsub.f32 %v67, %v547
    %v549 = vand.u32 %v548, 4294901760
    %v550 = vsub.f32 %v548, %v549
    %v551 = vand.u32 %v550, 4294901760
    %552 = vmatpush.msra.mxu0 %v551
    %v553 = vand.u32 %v65, 4294901760
    %v554 = vsub.f32 %v65, %v553
    %v555 = vand.u32 %v554, 4294901760
    %v556 = vsub.f32 %v554, %v555
    %v557 = vand.u32 %v556, 4294901760
    %558 = vmatpush.msra.mxu0 %v557
    %v559 = vand.u32 %v63, 4294901760
    %v560 = vsub.f32 %v63, %v559
    %v561 = vand.u32 %v560, 4294901760
    %v562 = vsub.f32 %v560, %v561
    %v563 = vand.u32 %v562, 4294901760
    %564 = vmatpush.msra.mxu0 %v563
    %v565 = vand.u32 %v61, 4294901760
    %v566 = vsub.f32 %v61, %v565
    %v567 = vand.u32 %v566, 4294901760
    %v568 = vsub.f32 %v566, %v567
    %v569 = vand.u32 %v568, 4294901760
    %570 = vmatpush.msra.mxu0 %v569
    %v571 = vand.u32 %v28, 4294901760
    %572 = vmatmul.f32.gmra.mxu0 %v571
    %v573 = vpop.f32.mrf.mxu0
    %v574 = vadd.f32 %v473, %v573
    %575 = vdwg.mxu0
    %v576 = vand.u32 %v91, 4294901760
    %v577 = vsub.f32 %v91, %v576
    %578 = vmatpush.msra.mxu0 %v577
    %v579 = vand.u32 %v89, 4294901760
    %v580 = vsub.f32 %v89, %v579
    %581 = vmatpush.msra.mxu0 %v580
    %v582 = vand.u32 %v87, 4294901760
    %v583 = vsub.f32 %v87, %v582
    %584 = vmatpush.msra.mxu0 %v583
    %v585 = vand.u32 %v85, 4294901760
    %v586 = vsub.f32 %v85, %v585
    %587 = vmatpush.msra.mxu0 %v586
    %v588 = vand.u32 %v83, 4294901760
    %v589 = vsub.f32 %v83, %v588
    %590 = vmatpush.msra.mxu0 %v589
    %v591 = vand.u32 %v81, 4294901760
    %v592 = vsub.f32 %v81, %v591
    %593 = vmatpush.msra.mxu0 %v592
    %v594 = vand.u32 %v79, 4294901760
    %v595 = vsub.f32 %v79, %v594
    %596 = vmatpush.msra.mxu0 %v595
    %v597 = vand.u32 %v77, 4294901760
    %v598 = vsub.f32 %v77, %v597
    %599 = vmatpush.msra.mxu0 %v598
    %v600 = vand.u32 %v75, 4294901760
    %v601 = vsub.f32 %v75, %v600
    %602 = vmatpush.msra.mxu0 %v601
    %v603 = vand.u32 %v73, 4294901760
    %v604 = vsub.f32 %v73, %v603
    %605 = vmatpush.msra.mxu0 %v604
    %v606 = vand.u32 %v71, 4294901760
    %v607 = vsub.f32 %v71, %v606
    %608 = vmatpush.msra.mxu0 %v607
    %v609 = vand.u32 %v69, 4294901760
    %v610 = vsub.f32 %v69, %v609
    %611 = vmatpush.msra.mxu0 %v610
    %v612 = vand.u32 %v67, 4294901760
    %v613 = vsub.f32 %v67, %v612
    %614 = vmatpush.msra.mxu0 %v613
    %v615 = vand.u32 %v65, 4294901760
    %v616 = vsub.f32 %v65, %v615
    %617 = vmatpush.msra.mxu0 %v616
    %v618 = vand.u32 %v63, 4294901760
    %v619 = vsub.f32 %v63, %v618
    %620 = vmatpush.msra.mxu0 %v619
    %v621 = vand.u32 %v61, 4294901760
    %v622 = vsub.f32 %v61, %v621
    %623 = vmatpush.msra.mxu0 %v622
    %v624 = vand.u32 %v28, 4294901760
    %v625 = vsub.f32 %v28, %v624
    %626 = vmatmul.f32.gmra.mxu0 %v625
    %v627 = vpop.f32.mrf.mxu0
    %v628 = vadd.f32 %v574, %v627
    %629 = vdwg.mxu0
    %v630 = vand.u32 %v91, 4294901760
    %631 = vmatpush.msra.mxu0 %v630
    %v632 = vand.u32 %v89, 4294901760
    %633 = vmatpush.msra.mxu0 %v632
    %v634 = vand.u32 %v87, 4294901760
    %635 = vmatpush.msra.mxu0 %v634
    %v636 = vand.u32 %v85, 4294901760
    %637 = vmatpush.msra.mxu0 %v636
    %v638 = vand.u32 %v83, 4294901760
    %639 = vmatpush.msra.mxu0 %v638
    %v640 = vand.u32 %v81, 4294901760
    %641 = vmatpush.msra.mxu0 %v640
    %v642 = vand.u32 %v79, 4294901760
    %643 = vmatpush.msra.mxu0 %v642
    %v644 = vand.u32 %v77, 4294901760
    %645 = vmatpush.msra.mxu0 %v644
    %v646 = vand.u32 %v75, 4294901760
    %647 = vmatpush.msra.mxu0 %v646
    %v648 = vand.u32 %v73, 4294901760
    %649 = vmatpush.msra.mxu0 %v648
    %v650 = vand.u32 %v71, 4294901760
    %651 = vmatpush.msra.mxu0 %v650
    %v652 = vand.u32 %v69, 4294901760
    %653 = vmatpush.msra.mxu0 %v652
    %v654 = vand.u32 %v67, 4294901760
    %655 = vmatpush.msra.mxu0 %v654
    %v656 = vand.u32 %v65, 4294901760
    %657 = vmatpush.msra.mxu0 %v656
    %v658 = vand.u32 %v63, 4294901760
    %659 = vmatpush.msra.mxu0 %v658
    %v660 = vand.u32 %v61, 4294901760
    %661 = vmatpush.msra.mxu0 %v660
    %v662 = vand.u32 %v28, 4294901760
    %v663 = vsub.f32 %v28, %v662
    %v664 = vand.u32 %v663, 4294901760
    %665 = vmatmul.f32.gmra.mxu0 %v664
    %v666 = vpop.f32.mrf.mxu0
    %v667 = vadd.f32 %v628, %v666
    %668 = vdwg.mxu0
    %v669 = vand.u32 %v91, 4294901760
    %v670 = vsub.f32 %v91, %v669
    %v671 = vand.u32 %v670, 4294901760
    %672 = vmatpush.msra.mxu0 %v671
    %v673 = vand.u32 %v89, 4294901760
    %v674 = vsub.f32 %v89, %v673
    %v675 = vand.u32 %v674, 4294901760
    %676 = vmatpush.msra.mxu0 %v675
    %v677 = vand.u32 %v87, 4294901760
    %v678 = vsub.f32 %v87, %v677
    %v679 = vand.u32 %v678, 4294901760
    %680 = vmatpush.msra.mxu0 %v679
    %v681 = vand.u32 %v85, 4294901760
    %v682 = vsub.f32 %v85, %v681
    %v683 = vand.u32 %v682, 4294901760
    %684 = vmatpush.msra.mxu0 %v683
    %v685 = vand.u32 %v83, 4294901760
    %v686 = vsub.f32 %v83, %v685
    %v687 = vand.u32 %v686, 4294901760
    %688 = vmatpush.msra.mxu0 %v687
    %v689 = vand.u32 %v81, 4294901760
    %v690 = vsub.f32 %v81, %v689
    %v691 = vand.u32 %v690, 4294901760
    %692 = vmatpush.msra.mxu0 %v691
    %v693 = vand.u32 %v79, 4294901760
    %v694 = vsub.f32 %v79, %v693
    %v695 = vand.u32 %v694, 4294901760
    %696 = vmatpush.msra.mxu0 %v695
    %v697 = vand.u32 %v77, 4294901760
    %v698 = vsub.f32 %v77, %v697
    %v699 = vand.u32 %v698, 4294901760
    %700 = vmatpush.msra.mxu0 %v699
    %v701 = vand.u32 %v75, 4294901760
    %v702 = vsub.f32 %v75, %v701
    %v703 = vand.u32 %v702, 4294901760
    %704 = vmatpush.msra.mxu0 %v703
    %v705 = vand.u32 %v73, 4294901760
    %v706 = vsub.f32 %v73, %v705
    %v707 = vand.u32 %v706, 4294901760
    %708 = vmatpush.msra.mxu0 %v707
    %v709 = vand.u32 %v71, 4294901760
    %v710 = vsub.f32 %v71, %v709
    %v711 = vand.u32 %v710, 4294901760
    %712 = vmatpush.msra.mxu0 %v711
    %v713 = vand.u32 %v69, 4294901760
    %v714 = vsub.f32 %v69, %v713
    %v715 = vand.u32 %v714, 4294901760
    %716 = vmatpush.msra.mxu0 %v715
    %v717 = vand.u32 %v67, 4294901760
    %v718 = vsub.f32 %v67, %v717
    %v719 = vand.u32 %v718, 4294901760
    %720 = vmatpush.msra.mxu0 %v719
    %v721 = vand.u32 %v65, 4294901760
    %v722 = vsub.f32 %v65, %v721
    %v723 = vand.u32 %v722, 4294901760
    %724 = vmatpush.msra.mxu0 %v723
    %v725 = vand.u32 %v63, 4294901760
    %v726 = vsub.f32 %v63, %v725
    %v727 = vand.u32 %v726, 4294901760
    %728 = vmatpush.msra.mxu0 %v727
    %v729 = vand.u32 %v61, 4294901760
    %v730 = vsub.f32 %v61, %v729
    %v731 = vand.u32 %v730, 4294901760
    %732 = vmatpush.msra.mxu0 %v731
    %v733 = vand.u32 %v28, 4294901760
    %734 = vmatmul.f32.gmra.mxu0 %v733
    %v735 = vpop.f32.mrf.mxu0
    %v736 = vadd.f32 %v667, %v735
    %737 = vdwg.mxu0
    %v738 = vand.u32 %v91, 4294901760
    %739 = vmatpush.msra.mxu0 %v738
    %v740 = vand.u32 %v89, 4294901760
    %741 = vmatpush.msra.mxu0 %v740
    %v742 = vand.u32 %v87, 4294901760
    %743 = vmatpush.msra.mxu0 %v742
    %v744 = vand.u32 %v85, 4294901760
    %745 = vmatpush.msra.mxu0 %v744
    %v746 = vand.u32 %v83, 4294901760
    %747 = vmatpush.msra.mxu0 %v746
    %v748 = vand.u32 %v81, 4294901760
    %749 = vmatpush.msra.mxu0 %v748
    %v750 = vand.u32 %v79, 4294901760
    %751 = vmatpush.msra.mxu0 %v750
    %v752 = vand.u32 %v77, 4294901760
    %753 = vmatpush.msra.mxu0 %v752
    %v754 = vand.u32 %v75, 4294901760
    %755 = vmatpush.msra.mxu0 %v754
    %v756 = vand.u32 %v73, 4294901760
    %757 = vmatpush.msra.mxu0 %v756
    %v758 = vand.u32 %v71, 4294901760
    %759 = vmatpush.msra.mxu0 %v758
    %v760 = vand.u32 %v69, 4294901760
    %761 = vmatpush.msra.mxu0 %v760
    %v762 = vand.u32 %v67, 4294901760
    %763 = vmatpush.msra.mxu0 %v762
    %v764 = vand.u32 %v65, 4294901760
    %765 = vmatpush.msra.mxu0 %v764
    %v766 = vand.u32 %v63, 4294901760
    %767 = vmatpush.msra.mxu0 %v766
    %v768 = vand.u32 %v61, 4294901760
    %769 = vmatpush.msra.mxu0 %v768
    %v770 = vand.u32 %v28, 4294901760
    %771 = vmatmul.f32.gmra.mxu0 %v770
    %v772 = vpop.f32.mrf.mxu0
    %v773 = vadd.f32 %v736, %v772
    %774 = vdwg.mxu0
    %v775 = vand.u32 %v60, 4294901760
    %776 = vmatpush.msra.mxu0 %v775
    %v777 = vand.u32 %v58, 4294901760
    %778 = vmatpush.msra.mxu0 %v777
    %v779 = vand.u32 %v56, 4294901760
    %780 = vmatpush.msra.mxu0 %v779
    %v781 = vand.u32 %v54, 4294901760
    %782 = vmatpush.msra.mxu0 %v781
    %v783 = vand.u32 %v52, 4294901760
    %784 = vmatpush.msra.mxu0 %v783
    %v785 = vand.u32 %v50, 4294901760
    %786 = vmatpush.msra.mxu0 %v785
    %v787 = vand.u32 %v48, 4294901760
    %788 = vmatpush.msra.mxu0 %v787
    %v789 = vand.u32 %v46, 4294901760
    %790 = vmatpush.msra.mxu0 %v789
    %v791 = vand.u32 %v44, 4294901760
    %792 = vmatpush.msra.mxu0 %v791
    %v793 = vand.u32 %v42, 4294901760
    %794 = vmatpush.msra.mxu0 %v793
    %v795 = vand.u32 %v40, 4294901760
    %796 = vmatpush.msra.mxu0 %v795
    %v797 = vand.u32 %v38, 4294901760
    %798 = vmatpush.msra.mxu0 %v797
    %v799 = vand.u32 %v36, 4294901760
    %800 = vmatpush.msra.mxu0 %v799
    %v801 = vand.u32 %v34, 4294901760
    %802 = vmatpush.msra.mxu0 %v801
    %v803 = vand.u32 %v32, 4294901760
    %804 = vmatpush.msra.mxu0 %v803
    %v805 = vand.u32 %v30, 4294901760
    %806 = vmatpush.msra.mxu0 %v805
    %v807 = vand.u32 %v27, 4294901760
    %v808 = vsub.f32 %v27, %v807
    %v809 = vand.u32 %v808, 4294901760
    %v810 = vsub.f32 %v808, %v809
    %v811 = vand.u32 %v810, 4294901760
    %812 = vmatmul.f32.gmra.mxu0 %v811
    %v813 = vpop.f32.mrf.mxu0
    %v814 = vadd.f32 0.0, %v813
    %815 = vdwg.mxu0
    %v816 = vand.u32 %v60, 4294901760
    %v817 = vsub.f32 %v60, %v816
    %v818 = vand.u32 %v817, 4294901760
    %v819 = vsub.f32 %v817, %v818
    %v820 = vand.u32 %v819, 4294901760
    %821 = vmatpush.msra.mxu0 %v820
    %v822 = vand.u32 %v58, 4294901760
    %v823 = vsub.f32 %v58, %v822
    %v824 = vand.u32 %v823, 4294901760
    %v825 = vsub.f32 %v823, %v824
    %v826 = vand.u32 %v825, 4294901760
    %827 = vmatpush.msra.mxu0 %v826
    %v828 = vand.u32 %v56, 4294901760
    %v829 = vsub.f32 %v56, %v828
    %v830 = vand.u32 %v829, 4294901760
    %v831 = vsub.f32 %v829, %v830
    %v832 = vand.u32 %v831, 4294901760
    %833 = vmatpush.msra.mxu0 %v832
    %v834 = vand.u32 %v54, 4294901760
    %v835 = vsub.f32 %v54, %v834
    %v836 = vand.u32 %v835, 4294901760
    %v837 = vsub.f32 %v835, %v836
    %v838 = vand.u32 %v837, 4294901760
    %839 = vmatpush.msra.mxu0 %v838
    %v840 = vand.u32 %v52, 4294901760
    %v841 = vsub.f32 %v52, %v840
    %v842 = vand.u32 %v841, 4294901760
    %v843 = vsub.f32 %v841, %v842
    %v844 = vand.u32 %v843, 4294901760
    %845 = vmatpush.msra.mxu0 %v844
    %v846 = vand.u32 %v50, 4294901760
    %v847 = vsub.f32 %v50, %v846
    %v848 = vand.u32 %v847, 4294901760
    %v849 = vsub.f32 %v847, %v848
    %v850 = vand.u32 %v849, 4294901760
    %851 = vmatpush.msra.mxu0 %v850
    %v852 = vand.u32 %v48, 4294901760
    %v853 = vsub.f32 %v48, %v852
    %v854 = vand.u32 %v853, 4294901760
    %v855 = vsub.f32 %v853, %v854
    %v856 = vand.u32 %v855, 4294901760
    %857 = vmatpush.msra.mxu0 %v856
    %v858 = vand.u32 %v46, 4294901760
    %v859 = vsub.f32 %v46, %v858
    %v860 = vand.u32 %v859, 4294901760
    %v861 = vsub.f32 %v859, %v860
    %v862 = vand.u32 %v861, 4294901760
    %863 = vmatpush.msra.mxu0 %v862
    %v864 = vand.u32 %v44, 4294901760
    %v865 = vsub.f32 %v44, %v864
    %v866 = vand.u32 %v865, 4294901760
    %v867 = vsub.f32 %v865, %v866
    %v868 = vand.u32 %v867, 4294901760
    %869 = vmatpush.msra.mxu0 %v868
    %v870 = vand.u32 %v42, 4294901760
    %v871 = vsub.f32 %v42, %v870
    %v872 = vand.u32 %v871, 4294901760
    %v873 = vsub.f32 %v871, %v872
    %v874 = vand.u32 %v873, 4294901760
    %875 = vmatpush.msra.mxu0 %v874
    %v876 = vand.u32 %v40, 4294901760
    %v877 = vsub.f32 %v40, %v876
    %v878 = vand.u32 %v877, 4294901760
    %v879 = vsub.f32 %v877, %v878
    %v880 = vand.u32 %v879, 4294901760
    %881 = vmatpush.msra.mxu0 %v880
    %v882 = vand.u32 %v38, 4294901760
    %v883 = vsub.f32 %v38, %v882
    %v884 = vand.u32 %v883, 4294901760
    %v885 = vsub.f32 %v883, %v884
    %v886 = vand.u32 %v885, 4294901760
    %887 = vmatpush.msra.mxu0 %v886
    %v888 = vand.u32 %v36, 4294901760
    %v889 = vsub.f32 %v36, %v888
    %v890 = vand.u32 %v889, 4294901760
    %v891 = vsub.f32 %v889, %v890
    %v892 = vand.u32 %v891, 4294901760
    %893 = vmatpush.msra.mxu0 %v892
    %v894 = vand.u32 %v34, 4294901760
    %v895 = vsub.f32 %v34, %v894
    %v896 = vand.u32 %v895, 4294901760
    %v897 = vsub.f32 %v895, %v896
    %v898 = vand.u32 %v897, 4294901760
    %899 = vmatpush.msra.mxu0 %v898
    %v900 = vand.u32 %v32, 4294901760
    %v901 = vsub.f32 %v32, %v900
    %v902 = vand.u32 %v901, 4294901760
    %v903 = vsub.f32 %v901, %v902
    %v904 = vand.u32 %v903, 4294901760
    %905 = vmatpush.msra.mxu0 %v904
    %v906 = vand.u32 %v30, 4294901760
    %v907 = vsub.f32 %v30, %v906
    %v908 = vand.u32 %v907, 4294901760
    %v909 = vsub.f32 %v907, %v908
    %v910 = vand.u32 %v909, 4294901760
    %911 = vmatpush.msra.mxu0 %v910
    %v912 = vand.u32 %v27, 4294901760
    %913 = vmatmul.f32.gmra.mxu0 %v912
    %v914 = vpop.f32.mrf.mxu0
    %v915 = vadd.f32 %v814, %v914
    %916 = vdwg.mxu0
    %v917 = vand.u32 %v60, 4294901760
    %v918 = vsub.f32 %v60, %v917
    %919 = vmatpush.msra.mxu0 %v918
    %v920 = vand.u32 %v58, 4294901760
    %v921 = vsub.f32 %v58, %v920
    %922 = vmatpush.msra.mxu0 %v921
    %v923 = vand.u32 %v56, 4294901760
    %v924 = vsub.f32 %v56, %v923
    %925 = vmatpush.msra.mxu0 %v924
    %v926 = vand.u32 %v54, 4294901760
    %v927 = vsub.f32 %v54, %v926
    %928 = vmatpush.msra.mxu0 %v927
    %v929 = vand.u32 %v52, 4294901760
    %v930 = vsub.f32 %v52, %v929
    %931 = vmatpush.msra.mxu0 %v930
    %v932 = vand.u32 %v50, 4294901760
    %v933 = vsub.f32 %v50, %v932
    %934 = vmatpush.msra.mxu0 %v933
    %v935 = vand.u32 %v48, 4294901760
    %v936 = vsub.f32 %v48, %v935
    %937 = vmatpush.msra.mxu0 %v936
    %v938 = vand.u32 %v46, 4294901760
    %v939 = vsub.f32 %v46, %v938
    %940 = vmatpush.msra.mxu0 %v939
    %v941 = vand.u32 %v44, 4294901760
    %v942 = vsub.f32 %v44, %v941
    %943 = vmatpush.msra.mxu0 %v942
    %v944 = vand.u32 %v42, 4294901760
    %v945 = vsub.f32 %v42, %v944
    %946 = vmatpush.msra.mxu0 %v945
    %v947 = vand.u32 %v40, 4294901760
    %v948 = vsub.f32 %v40, %v947
    %949 = vmatpush.msra.mxu0 %v948
    %v950 = vand.u32 %v38, 4294901760
    %v951 = vsub.f32 %v38, %v950
    %952 = vmatpush.msra.mxu0 %v951
    %v953 = vand.u32 %v36, 4294901760
    %v954 = vsub.f32 %v36, %v953
    %955 = vmatpush.msra.mxu0 %v954
    %v956 = vand.u32 %v34, 4294901760
    %v957 = vsub.f32 %v34, %v956
    %958 = vmatpush.msra.mxu0 %v957
    %v959 = vand.u32 %v32, 4294901760
    %v960 = vsub.f32 %v32, %v959
    %961 = vmatpush.msra.mxu0 %v960
    %v962 = vand.u32 %v30, 4294901760
    %v963 = vsub.f32 %v30, %v962
    %964 = vmatpush.msra.mxu0 %v963
    %v965 = vand.u32 %v27, 4294901760
    %v966 = vsub.f32 %v27, %v965
    %967 = vmatmul.f32.gmra.mxu0 %v966
    %v968 = vpop.f32.mrf.mxu0
    %v969 = vadd.f32 %v915, %v968
    %970 = vdwg.mxu0
    %v971 = vand.u32 %v60, 4294901760
    %972 = vmatpush.msra.mxu0 %v971
    %v973 = vand.u32 %v58, 4294901760
    %974 = vmatpush.msra.mxu0 %v973
    %v975 = vand.u32 %v56, 4294901760
    %976 = vmatpush.msra.mxu0 %v975
    %v977 = vand.u32 %v54, 4294901760
    %978 = vmatpush.msra.mxu0 %v977
    %v979 = vand.u32 %v52, 4294901760
    %980 = vmatpush.msra.mxu0 %v979
    %v981 = vand.u32 %v50, 4294901760
    %982 = vmatpush.msra.mxu0 %v981
    %v983 = vand.u32 %v48, 4294901760
    %984 = vmatpush.msra.mxu0 %v983
    %v985 = vand.u32 %v46, 4294901760
    %986 = vmatpush.msra.mxu0 %v985
    %v987 = vand.u32 %v44, 4294901760
    %988 = vmatpush.msra.mxu0 %v987
    %v989 = vand.u32 %v42, 4294901760
    %990 = vmatpush.msra.mxu0 %v989
    %v991 = vand.u32 %v40, 4294901760
    %992 = vmatpush.msra.mxu0 %v991
    %v993 = vand.u32 %v38, 4294901760
    %994 = vmatpush.msra.mxu0 %v993
    %v995 = vand.u32 %v36, 4294901760
    %996 = vmatpush.msra.mxu0 %v995
    %v997 = vand.u32 %v34, 4294901760
    %998 = vmatpush.msra.mxu0 %v997
    %v999 = vand.u32 %v32, 4294901760
    %1000 = vmatpush.msra.mxu0 %v999
    %v1001 = vand.u32 %v30, 4294901760
    %1002 = vmatpush.msra.mxu0 %v1001
    %v1003 = vand.u32 %v27, 4294901760
    %v1004 = vsub.f32 %v27, %v1003
    %v1005 = vand.u32 %v1004, 4294901760
    %1006 = vmatmul.f32.gmra.mxu0 %v1005
    %v1007 = vpop.f32.mrf.mxu0
    %v1008 = vadd.f32 %v969, %v1007
    %1009 = vdwg.mxu0
    %v1010 = vand.u32 %v60, 4294901760
    %v1011 = vsub.f32 %v60, %v1010
    %v1012 = vand.u32 %v1011, 4294901760
    %1013 = vmatpush.msra.mxu0 %v1012
    %v1014 = vand.u32 %v58, 4294901760
    %v1015 = vsub.f32 %v58, %v1014
    %v1016 = vand.u32 %v1015, 4294901760
    %1017 = vmatpush.msra.mxu0 %v1016
    %v1018 = vand.u32 %v56, 4294901760
    %v1019 = vsub.f32 %v56, %v1018
    %v1020 = vand.u32 %v1019, 4294901760
    %1021 = vmatpush.msra.mxu0 %v1020
    %v1022 = vand.u32 %v54, 4294901760
    %v1023 = vsub.f32 %v54, %v1022
    %v1024 = vand.u32 %v1023, 4294901760
    %1025 = vmatpush.msra.mxu0 %v1024
    %v1026 = vand.u32 %v52, 4294901760
    %v1027 = vsub.f32 %v52, %v1026
    %v1028 = vand.u32 %v1027, 4294901760
    %1029 = vmatpush.msra.mxu0 %v1028
    %v1030 = vand.u32 %v50, 4294901760
    %v1031 = vsub.f32 %v50, %v1030
    %v1032 = vand.u32 %v1031, 4294901760
    %1033 = vmatpush.msra.mxu0 %v1032
    %v1034 = vand.u32 %v48, 4294901760
    %v1035 = vsub.f32 %v48, %v1034
    %v1036 = vand.u32 %v1035, 4294901760
    %1037 = vmatpush.msra.mxu0 %v1036
    %v1038 = vand.u32 %v46, 4294901760
    %v1039 = vsub.f32 %v46, %v1038
    %v1040 = vand.u32 %v1039, 4294901760
    %1041 = vmatpush.msra.mxu0 %v1040
    %v1042 = vand.u32 %v44, 4294901760
    %v1043 = vsub.f32 %v44, %v1042
    %v1044 = vand.u32 %v1043, 4294901760
    %1045 = vmatpush.msra.mxu0 %v1044
    %v1046 = vand.u32 %v42, 4294901760
    %v1047 = vsub.f32 %v42, %v1046
    %v1048 = vand.u32 %v1047, 4294901760
    %1049 = vmatpush.msra.mxu0 %v1048
    %v1050 = vand.u32 %v40, 4294901760
    %v1051 = vsub.f32 %v40, %v1050
    %v1052 = vand.u32 %v1051, 4294901760
    %1053 = vmatpush.msra.mxu0 %v1052
    %v1054 = vand.u32 %v38, 4294901760
    %v1055 = vsub.f32 %v38, %v1054
    %v1056 = vand.u32 %v1055, 4294901760
    %1057 = vmatpush.msra.mxu0 %v1056
    %v1058 = vand.u32 %v36, 4294901760
    %v1059 = vsub.f32 %v36, %v1058
    %v1060 = vand.u32 %v1059, 4294901760
    %1061 = vmatpush.msra.mxu0 %v1060
    %v1062 = vand.u32 %v34, 4294901760
    %v1063 = vsub.f32 %v34, %v1062
    %v1064 = vand.u32 %v1063, 4294901760
    %1065 = vmatpush.msra.mxu0 %v1064
    %v1066 = vand.u32 %v32, 4294901760
    %v1067 = vsub.f32 %v32, %v1066
    %v1068 = vand.u32 %v1067, 4294901760
    %1069 = vmatpush.msra.mxu0 %v1068
    %v1070 = vand.u32 %v30, 4294901760
    %v1071 = vsub.f32 %v30, %v1070
    %v1072 = vand.u32 %v1071, 4294901760
    %1073 = vmatpush.msra.mxu0 %v1072
    %v1074 = vand.u32 %v27, 4294901760
    %1075 = vmatmul.f32.gmra.mxu0 %v1074
    %v1076 = vpop.f32.mrf.mxu0
    %v1077 = vadd.f32 %v1008, %v1076
    %1078 = vdwg.mxu0
    %v1079 = vand.u32 %v60, 4294901760
    %1080 = vmatpush.msra.mxu0 %v1079
    %v1081 = vand.u32 %v58, 4294901760
    %1082 = vmatpush.msra.mxu0 %v1081
    %v1083 = vand.u32 %v56, 4294901760
    %1084 = vmatpush.msra.mxu0 %v1083
    %v1085 = vand.u32 %v54, 4294901760
    %1086 = vmatpush.msra.mxu0 %v1085
    %v1087 = vand.u32 %v52, 4294901760
    %1088 = vmatpush.msra.mxu0 %v1087
    %v1089 = vand.u32 %v50, 4294901760
    %1090 = vmatpush.msra.mxu0 %v1089
    %v1091 = vand.u32 %v48, 4294901760
    %1092 = vmatpush.msra.mxu0 %v1091
    %v1093 = vand.u32 %v46, 4294901760
    %1094 = vmatpush.msra.mxu0 %v1093
    %v1095 = vand.u32 %v44, 4294901760
    %1096 = vmatpush.msra.mxu0 %v1095
    %v1097 = vand.u32 %v42, 4294901760
    %1098 = vmatpush.msra.mxu0 %v1097
    %v1099 = vand.u32 %v40, 4294901760
    %1100 = vmatpush.msra.mxu0 %v1099
    %v1101 = vand.u32 %v38, 4294901760
    %1102 = vmatpush.msra.mxu0 %v1101
    %v1103 = vand.u32 %v36, 4294901760
    %1104 = vmatpush.msra.mxu0 %v1103
    %v1105 = vand.u32 %v34, 4294901760
    %1106 = vmatpush.msra.mxu0 %v1105
    %v1107 = vand.u32 %v32, 4294901760
    %1108 = vmatpush.msra.mxu0 %v1107
    %v1109 = vand.u32 %v30, 4294901760
    %1110 = vmatpush.msra.mxu0 %v1109
    %v1111 = vand.u32 %v27, 4294901760
    %1112 = vmatmul.f32.gmra.mxu0 %v1111
    %v1113 = vpop.f32.mrf.mxu0
    %v1114 = vadd.f32 %v1077, %v1113
    %1115 = vdwg.mxu0
    %v1116 = vand.u32 %v92, 4294901760
    %1117 = vmatpush.msra.mxu0 %v1116
    %v1118 = vand.u32 %v90, 4294901760
    %1119 = vmatpush.msra.mxu0 %v1118
    %v1120 = vand.u32 %v88, 4294901760
    %1121 = vmatpush.msra.mxu0 %v1120
    %v1122 = vand.u32 %v86, 4294901760
    %1123 = vmatpush.msra.mxu0 %v1122
    %v1124 = vand.u32 %v84, 4294901760
    %1125 = vmatpush.msra.mxu0 %v1124
    %v1126 = vand.u32 %v82, 4294901760
    %1127 = vmatpush.msra.mxu0 %v1126
    %v1128 = vand.u32 %v80, 4294901760
    %1129 = vmatpush.msra.mxu0 %v1128
    %v1130 = vand.u32 %v78, 4294901760
    %1131 = vmatpush.msra.mxu0 %v1130
    %v1132 = vand.u32 %v76, 4294901760
    %1133 = vmatpush.msra.mxu0 %v1132
    %v1134 = vand.u32 %v74, 4294901760
    %1135 = vmatpush.msra.mxu0 %v1134
    %v1136 = vand.u32 %v72, 4294901760
    %1137 = vmatpush.msra.mxu0 %v1136
    %v1138 = vand.u32 %v70, 4294901760
    %1139 = vmatpush.msra.mxu0 %v1138
    %v1140 = vand.u32 %v68, 4294901760
    %1141 = vmatpush.msra.mxu0 %v1140
    %v1142 = vand.u32 %v66, 4294901760
    %1143 = vmatpush.msra.mxu0 %v1142
    %v1144 = vand.u32 %v64, 4294901760
    %1145 = vmatpush.msra.mxu0 %v1144
    %v1146 = vand.u32 %v62, 4294901760
    %1147 = vmatpush.msra.mxu0 %v1146
    %v1148 = vand.u32 %v28, 4294901760
    %v1149 = vsub.f32 %v28, %v1148
    %v1150 = vand.u32 %v1149, 4294901760
    %v1151 = vsub.f32 %v1149, %v1150
    %v1152 = vand.u32 %v1151, 4294901760
    %1153 = vmatmul.f32.gmra.mxu0 %v1152
    %v1154 = vpop.f32.mrf.mxu0
    %v1155 = vadd.f32 %v1114, %v1154
    %1156 = vdwg.mxu0
    %v1157 = vand.u32 %v92, 4294901760
    %v1158 = vsub.f32 %v92, %v1157
    %v1159 = vand.u32 %v1158, 4294901760
    %v1160 = vsub.f32 %v1158, %v1159
    %v1161 = vand.u32 %v1160, 4294901760
    %1162 = vmatpush.msra.mxu0 %v1161
    %v1163 = vand.u32 %v90, 4294901760
    %v1164 = vsub.f32 %v90, %v1163
    %v1165 = vand.u32 %v1164, 4294901760
    %v1166 = vsub.f32 %v1164, %v1165
    %v1167 = vand.u32 %v1166, 4294901760
    %1168 = vmatpush.msra.mxu0 %v1167
    %v1169 = vand.u32 %v88, 4294901760
    %v1170 = vsub.f32 %v88, %v1169
    %v1171 = vand.u32 %v1170, 4294901760
    %v1172 = vsub.f32 %v1170, %v1171
    %v1173 = vand.u32 %v1172, 4294901760
    %1174 = vmatpush.msra.mxu0 %v1173
    %v1175 = vand.u32 %v86, 4294901760
    %v1176 = vsub.f32 %v86, %v1175
    %v1177 = vand.u32 %v1176, 4294901760
    %v1178 = vsub.f32 %v1176, %v1177
    %v1179 = vand.u32 %v1178, 4294901760
    %1180 = vmatpush.msra.mxu0 %v1179
    %v1181 = vand.u32 %v84, 4294901760
    %v1182 = vsub.f32 %v84, %v1181
    %v1183 = vand.u32 %v1182, 4294901760
    %v1184 = vsub.f32 %v1182, %v1183
    %v1185 = vand.u32 %v1184, 4294901760
    %1186 = vmatpush.msra.mxu0 %v1185
    %v1187 = vand.u32 %v82, 4294901760
    %v1188 = vsub.f32 %v82, %v1187
    %v1189 = vand.u32 %v1188, 4294901760
    %v1190 = vsub.f32 %v1188, %v1189
    %v1191 = vand.u32 %v1190, 4294901760
    %1192 = vmatpush.msra.mxu0 %v1191
    %v1193 = vand.u32 %v80, 4294901760
    %v1194 = vsub.f32 %v80, %v1193
    %v1195 = vand.u32 %v1194, 4294901760
    %v1196 = vsub.f32 %v1194, %v1195
    %v1197 = vand.u32 %v1196, 4294901760
    %1198 = vmatpush.msra.mxu0 %v1197
    %v1199 = vand.u32 %v78, 4294901760
    %v1200 = vsub.f32 %v78, %v1199
    %v1201 = vand.u32 %v1200, 4294901760
    %v1202 = vsub.f32 %v1200, %v1201
    %v1203 = vand.u32 %v1202, 4294901760
    %1204 = vmatpush.msra.mxu0 %v1203
    %v1205 = vand.u32 %v76, 4294901760
    %v1206 = vsub.f32 %v76, %v1205
    %v1207 = vand.u32 %v1206, 4294901760
    %v1208 = vsub.f32 %v1206, %v1207
    %v1209 = vand.u32 %v1208, 4294901760
    %1210 = vmatpush.msra.mxu0 %v1209
    %v1211 = vand.u32 %v74, 4294901760
    %v1212 = vsub.f32 %v74, %v1211
    %v1213 = vand.u32 %v1212, 4294901760
    %v1214 = vsub.f32 %v1212, %v1213
    %v1215 = vand.u32 %v1214, 4294901760
    %1216 = vmatpush.msra.mxu0 %v1215
    %v1217 = vand.u32 %v72, 4294901760
    %v1218 = vsub.f32 %v72, %v1217
    %v1219 = vand.u32 %v1218, 4294901760
    %v1220 = vsub.f32 %v1218, %v1219
    %v1221 = vand.u32 %v1220, 4294901760
    %1222 = vmatpush.msra.mxu0 %v1221
    %v1223 = vand.u32 %v70, 4294901760
    %v1224 = vsub.f32 %v70, %v1223
    %v1225 = vand.u32 %v1224, 4294901760
    %v1226 = vsub.f32 %v1224, %v1225
    %v1227 = vand.u32 %v1226, 4294901760
    %1228 = vmatpush.msra.mxu0 %v1227
    %v1229 = vand.u32 %v68, 4294901760
    %v1230 = vsub.f32 %v68, %v1229
    %v1231 = vand.u32 %v1230, 4294901760
    %v1232 = vsub.f32 %v1230, %v1231
    %v1233 = vand.u32 %v1232, 4294901760
    %1234 = vmatpush.msra.mxu0 %v1233
    %v1235 = vand.u32 %v66, 4294901760
    %v1236 = vsub.f32 %v66, %v1235
    %v1237 = vand.u32 %v1236, 4294901760
    %v1238 = vsub.f32 %v1236, %v1237
    %v1239 = vand.u32 %v1238, 4294901760
    %1240 = vmatpush.msra.mxu0 %v1239
    %v1241 = vand.u32 %v64, 4294901760
    %v1242 = vsub.f32 %v64, %v1241
    %v1243 = vand.u32 %v1242, 4294901760
    %v1244 = vsub.f32 %v1242, %v1243
    %v1245 = vand.u32 %v1244, 4294901760
    %1246 = vmatpush.msra.mxu0 %v1245
    %v1247 = vand.u32 %v62, 4294901760
    %v1248 = vsub.f32 %v62, %v1247
    %v1249 = vand.u32 %v1248, 4294901760
    %v1250 = vsub.f32 %v1248, %v1249
    %v1251 = vand.u32 %v1250, 4294901760
    %1252 = vmatpush.msra.mxu0 %v1251
    %v1253 = vand.u32 %v28, 4294901760
    %1254 = vmatmul.f32.gmra.mxu0 %v1253
    %v1255 = vpop.f32.mrf.mxu0
    %v1256 = vadd.f32 %v1155, %v1255
    %1257 = vdwg.mxu0
    %v1258 = vand.u32 %v92, 4294901760
    %v1259 = vsub.f32 %v92, %v1258
    %1260 = vmatpush.msra.mxu0 %v1259
    %v1261 = vand.u32 %v90, 4294901760
    %v1262 = vsub.f32 %v90, %v1261
    %1263 = vmatpush.msra.mxu0 %v1262
    %v1264 = vand.u32 %v88, 4294901760
    %v1265 = vsub.f32 %v88, %v1264
    %1266 = vmatpush.msra.mxu0 %v1265
    %v1267 = vand.u32 %v86, 4294901760
    %v1268 = vsub.f32 %v86, %v1267
    %1269 = vmatpush.msra.mxu0 %v1268
    %v1270 = vand.u32 %v84, 4294901760
    %v1271 = vsub.f32 %v84, %v1270
    %1272 = vmatpush.msra.mxu0 %v1271
    %v1273 = vand.u32 %v82, 4294901760
    %v1274 = vsub.f32 %v82, %v1273
    %1275 = vmatpush.msra.mxu0 %v1274
    %v1276 = vand.u32 %v80, 4294901760
    %v1277 = vsub.f32 %v80, %v1276
    %1278 = vmatpush.msra.mxu0 %v1277
    %v1279 = vand.u32 %v78, 4294901760
    %v1280 = vsub.f32 %v78, %v1279
    %1281 = vmatpush.msra.mxu0 %v1280
    %v1282 = vand.u32 %v76, 4294901760
    %v1283 = vsub.f32 %v76, %v1282
    %1284 = vmatpush.msra.mxu0 %v1283
    %v1285 = vand.u32 %v74, 4294901760
    %v1286 = vsub.f32 %v74, %v1285
    %1287 = vmatpush.msra.mxu0 %v1286
    %v1288 = vand.u32 %v72, 4294901760
    %v1289 = vsub.f32 %v72, %v1288
    %1290 = vmatpush.msra.mxu0 %v1289
    %v1291 = vand.u32 %v70, 4294901760
    %v1292 = vsub.f32 %v70, %v1291
    %1293 = vmatpush.msra.mxu0 %v1292
    %v1294 = vand.u32 %v68, 4294901760
    %v1295 = vsub.f32 %v68, %v1294
    %1296 = vmatpush.msra.mxu0 %v1295
    %v1297 = vand.u32 %v66, 4294901760
    %v1298 = vsub.f32 %v66, %v1297
    %1299 = vmatpush.msra.mxu0 %v1298
    %v1300 = vand.u32 %v64, 4294901760
    %v1301 = vsub.f32 %v64, %v1300
    %1302 = vmatpush.msra.mxu0 %v1301
    %v1303 = vand.u32 %v62, 4294901760
    %v1304 = vsub.f32 %v62, %v1303
    %1305 = vmatpush.msra.mxu0 %v1304
    %v1306 = vand.u32 %v28, 4294901760
    %v1307 = vsub.f32 %v28, %v1306
    %1308 = vmatmul.f32.gmra.mxu0 %v1307
    %v1309 = vpop.f32.mrf.mxu0
    %v1310 = vadd.f32 %v1256, %v1309
    %1311 = vdwg.mxu0
    %v1312 = vand.u32 %v92, 4294901760
    %1313 = vmatpush.msra.mxu0 %v1312
    %v1314 = vand.u32 %v90, 4294901760
    %1315 = vmatpush.msra.mxu0 %v1314
    %v1316 = vand.u32 %v88, 4294901760
    %1317 = vmatpush.msra.mxu0 %v1316
    %v1318 = vand.u32 %v86, 4294901760
    %1319 = vmatpush.msra.mxu0 %v1318
    %v1320 = vand.u32 %v84, 4294901760
    %1321 = vmatpush.msra.mxu0 %v1320
    %v1322 = vand.u32 %v82, 4294901760
    %1323 = vmatpush.msra.mxu0 %v1322
    %v1324 = vand.u32 %v80, 4294901760
    %1325 = vmatpush.msra.mxu0 %v1324
    %v1326 = vand.u32 %v78, 4294901760
    %1327 = vmatpush.msra.mxu0 %v1326
    %v1328 = vand.u32 %v76, 4294901760
    %1329 = vmatpush.msra.mxu0 %v1328
    %v1330 = vand.u32 %v74, 4294901760
    %1331 = vmatpush.msra.mxu0 %v1330
    %v1332 = vand.u32 %v72, 4294901760
    %1333 = vmatpush.msra.mxu0 %v1332
    %v1334 = vand.u32 %v70, 4294901760
    %1335 = vmatpush.msra.mxu0 %v1334
    %v1336 = vand.u32 %v68, 4294901760
    %1337 = vmatpush.msra.mxu0 %v1336
    %v1338 = vand.u32 %v66, 4294901760
    %1339 = vmatpush.msra.mxu0 %v1338
    %v1340 = vand.u32 %v64, 4294901760
    %1341 = vmatpush.msra.mxu0 %v1340
    %v1342 = vand.u32 %v62, 4294901760
    %1343 = vmatpush.msra.mxu0 %v1342
    %v1344 = vand.u32 %v28, 4294901760
    %v1345 = vsub.f32 %v28, %v1344
    %v1346 = vand.u32 %v1345, 4294901760
    %1347 = vmatmul.f32.gmra.mxu0 %v1346
    %v1348 = vpop.f32.mrf.mxu0
    %v1349 = vadd.f32 %v1310, %v1348
    %1350 = vdwg.mxu0
    %v1351 = vand.u32 %v92, 4294901760
    %v1352 = vsub.f32 %v92, %v1351
    %v1353 = vand.u32 %v1352, 4294901760
    %1354 = vmatpush.msra.mxu0 %v1353
    %v1355 = vand.u32 %v90, 4294901760
    %v1356 = vsub.f32 %v90, %v1355
    %v1357 = vand.u32 %v1356, 4294901760
    %1358 = vmatpush.msra.mxu0 %v1357
    %v1359 = vand.u32 %v88, 4294901760
    %v1360 = vsub.f32 %v88, %v1359
    %v1361 = vand.u32 %v1360, 4294901760
    %1362 = vmatpush.msra.mxu0 %v1361
    %v1363 = vand.u32 %v86, 4294901760
    %v1364 = vsub.f32 %v86, %v1363
    %v1365 = vand.u32 %v1364, 4294901760
    %1366 = vmatpush.msra.mxu0 %v1365
    %v1367 = vand.u32 %v84, 4294901760
    %v1368 = vsub.f32 %v84, %v1367
    %v1369 = vand.u32 %v1368, 4294901760
    %1370 = vmatpush.msra.mxu0 %v1369
    %v1371 = vand.u32 %v82, 4294901760
    %v1372 = vsub.f32 %v82, %v1371
    %v1373 = vand.u32 %v1372, 4294901760
    %1374 = vmatpush.msra.mxu0 %v1373
    %v1375 = vand.u32 %v80, 4294901760
    %v1376 = vsub.f32 %v80, %v1375
    %v1377 = vand.u32 %v1376, 4294901760
    %1378 = vmatpush.msra.mxu0 %v1377
    %v1379 = vand.u32 %v78, 4294901760
    %v1380 = vsub.f32 %v78, %v1379
    %v1381 = vand.u32 %v1380, 4294901760
    %1382 = vmatpush.msra.mxu0 %v1381
    %v1383 = vand.u32 %v76, 4294901760
    %v1384 = vsub.f32 %v76, %v1383
    %v1385 = vand.u32 %v1384, 4294901760
    %1386 = vmatpush.msra.mxu0 %v1385
    %v1387 = vand.u32 %v74, 4294901760
    %v1388 = vsub.f32 %v74, %v1387
    %v1389 = vand.u32 %v1388, 4294901760
    %1390 = vmatpush.msra.mxu0 %v1389
    %v1391 = vand.u32 %v72, 4294901760
    %v1392 = vsub.f32 %v72, %v1391
    %v1393 = vand.u32 %v1392, 4294901760
    %1394 = vmatpush.msra.mxu0 %v1393
    %v1395 = vand.u32 %v70, 4294901760
    %v1396 = vsub.f32 %v70, %v1395
    %v1397 = vand.u32 %v1396, 4294901760
    %1398 = vmatpush.msra.mxu0 %v1397
    %v1399 = vand.u32 %v68, 4294901760
    %v1400 = vsub.f32 %v68, %v1399
    %v1401 = vand.u32 %v1400, 4294901760
    %1402 = vmatpush.msra.mxu0 %v1401
    %v1403 = vand.u32 %v66, 4294901760
    %v1404 = vsub.f32 %v66, %v1403
    %v1405 = vand.u32 %v1404, 4294901760
    %1406 = vmatpush.msra.mxu0 %v1405
    %v1407 = vand.u32 %v64, 4294901760
    %v1408 = vsub.f32 %v64, %v1407
    %v1409 = vand.u32 %v1408, 4294901760
    %1410 = vmatpush.msra.mxu0 %v1409
    %v1411 = vand.u32 %v62, 4294901760
    %v1412 = vsub.f32 %v62, %v1411
    %v1413 = vand.u32 %v1412, 4294901760
    %1414 = vmatpush.msra.mxu0 %v1413
    %v1415 = vand.u32 %v28, 4294901760
    %1416 = vmatmul.f32.gmra.mxu0 %v1415
    %v1417 = vpop.f32.mrf.mxu0
    %v1418 = vadd.f32 %v1349, %v1417
    %1419 = vdwg.mxu0
    %v1420 = vand.u32 %v92, 4294901760
    %1421 = vmatpush.msra.mxu0 %v1420
    %v1422 = vand.u32 %v90, 4294901760
    %1423 = vmatpush.msra.mxu0 %v1422
    %v1424 = vand.u32 %v88, 4294901760
    %1425 = vmatpush.msra.mxu0 %v1424
    %v1426 = vand.u32 %v86, 4294901760
    %1427 = vmatpush.msra.mxu0 %v1426
    %v1428 = vand.u32 %v84, 4294901760
    %1429 = vmatpush.msra.mxu0 %v1428
    %v1430 = vand.u32 %v82, 4294901760
    %1431 = vmatpush.msra.mxu0 %v1430
    %v1432 = vand.u32 %v80, 4294901760
    %1433 = vmatpush.msra.mxu0 %v1432
    %v1434 = vand.u32 %v78, 4294901760
    %1435 = vmatpush.msra.mxu0 %v1434
    %v1436 = vand.u32 %v76, 4294901760
    %1437 = vmatpush.msra.mxu0 %v1436
    %v1438 = vand.u32 %v74, 4294901760
    %1439 = vmatpush.msra.mxu0 %v1438
    %v1440 = vand.u32 %v72, 4294901760
    %1441 = vmatpush.msra.mxu0 %v1440
    %v1442 = vand.u32 %v70, 4294901760
    %1443 = vmatpush.msra.mxu0 %v1442
    %v1444 = vand.u32 %v68, 4294901760
    %1445 = vmatpush.msra.mxu0 %v1444
    %v1446 = vand.u32 %v66, 4294901760
    %1447 = vmatpush.msra.mxu0 %v1446
    %v1448 = vand.u32 %v64, 4294901760
    %1449 = vmatpush.msra.mxu0 %v1448
    %v1450 = vand.u32 %v62, 4294901760
    %1451 = vmatpush.msra.mxu0 %v1450
    %v1452 = vand.u32 %v28, 4294901760
    %1453 = vmatmul.f32.gmra.mxu0 %v1452
    %v1454 = vpop.f32.mrf.mxu0
    %v1455 = vadd.f32 %v1418, %v1454
    %1456 = vdwg.mxu0
    %1457 = vst [vmem:[%s2] sm:$0xff] %v773
    %1458 = vst [vmem:[%s2 + $0x8] sm:$0xff] %v1455
    // Predicated region
    $region14: #{down_pixel_w.1} parent=1 // pred_check
      _
    $region15: #{down_pixel_w.1} parent=1 // pred_check_branch
      %1460 = sbr.rel (0) target = $region17
    $region16: #{down_pixel_w.1} parent=1 // pred_region
      _
    $region17: #{down_pixel_w.1} parent=1 // pred_fallthru
      _
    // Predicated region
    $region18: #{down_pixel_w.1} parent=1 // pred_check
      _
    $region19: #{down_pixel_w.1} parent=1 // pred_check_branch
      %1462 = sbr.rel (0) target = $region21
    $region20: #{down_pixel_w.1} parent=1 // pred_region
      _
    $region21: #{down_pixel_w.1} parent=1 // pred_fallthru
      _
    %1463 = vsyncpa [#allocation3], 1

</llo_original>
